<compile_context>
chip_gen: v7x
topology: tpu7x:2x2x1
jax: 0.10.0
libtpu: 0.0.40
codegen_flags: <defaults>
</compile_context>

<pallas_src>
import functools

import jax
import jax.numpy as jnp
from jax import lax
from jax.experimental import pallas as pl
from jax.experimental.pallas import tpu as pltpu


def _gumbel_feature_importance_kernel(x_ref, wbd_ref, exp_ref, b_ref, g_ref,
                                      out_ref, soft_ref, *,
                                      hard: bool, tau: float, approx_recip: bool):
    # x_ref:    (TB, F*C) VMEM, native dtype, lane-dense ((F, C) flattened in the wrapper)
    # wbd_ref:  (F*C, F)  VMEM, x.dtype  block-diagonal Linear weight (w replicated per feature)
    # exp_ref:  (F, F*C)  VMEM, x.dtype  one-hot expansion matrix (repeats a feature scale C times)
    # b_ref:    (1, 1)    SMEM, f32     Linear bias
    # g_ref:    (TB, F)   VMEM, f32     standard Gumbel noise
    # out_ref:  (TB, F*C) VMEM, x.dtype
    # soft_ref: (TB, F)   VMEM, f32     gumbel_softmax output (hard or soft, = module's x_proj_soft)
    x = x_ref[...]                                              # (TB, FC) native dtype

    # proj(x).squeeze(-1): per-feature reduce over C done on the MXU via the block-diagonal
    # weight, so bf16 x feeds the MXU directly (no full-tile f32 upcast kept live).
    proj = jnp.dot(x, wbd_ref[...], preferred_element_type=jnp.float32)   # (TB, F) f32

    # gumbel_softmax(logits, tau, dim=-1) over the feature axis.
    logits = (proj + b_ref[0, 0] + g_ref[...]) * (1.0 / tau)    # (TB, F) f32
    m = jnp.max(logits, axis=-1, keepdims=True)

    if hard:
        # Straight-through forward value: one-hot at the (first) argmax of the logits.
        # x_proj_soft in the module IS this hard output, so writing it to soft_ref matches.
        # Soft exp/sum/reciprocal deliberately not computed (dead code in hard mode).
        F = logits.shape[-1]
        col = lax.broadcasted_iota(jnp.int32, logits.shape, 1)
        is_max = logits == m
        first_idx = jnp.min(jnp.where(is_max, col, F), axis=-1, keepdims=True)
        y_out = (col == first_idx).astype(jnp.float32)
    else:
        e = jnp.exp(logits - m)
        denom = jnp.sum(e, axis=-1, keepdims=True)
        y_out = e * pl.reciprocal(denom, approx=approx_recip)

    soft_ref[...] = y_out.astype(soft_ref.dtype)

    # Expand the per-feature scale across the C lanes of each feature (tiny one-hot matmul
    # on the otherwise-idle MXU) and do the final multiply in NATIVE dtype (bf16 VPU on
    # v6e/v7x; v5e internally widens, correctness unaffected).
    scale = jnp.dot(y_out.astype(x.dtype), exp_ref[...],
                    preferred_element_type=x.dtype)             # (TB, FC) native dtype
    out_ref[...] = (scale * x).astype(out_ref.dtype)


def _kernel_vmem_bytes(tb, FC, F, itemsize):
    """Conservative per-step VMEM estimate: double-buffered x/out/g/soft blocks (with lane
    padding on the (TB, F) tiles), the constant weight operands, and f32 temporaries."""
    f_lane = ((F + 127) // 128) * 128
    f_sub = ((F + 7) // 8) * 8
    blocks = 2 * (2 * tb * FC * itemsize            # x + out blocks, double-buffered
                  + 2 * tb * f_lane * 4)            # gumbel + soft blocks (f32, lane-padded)
    consts = 2 * (FC * f_lane * itemsize            # block-diagonal weight (lane-padded)
                  + f_sub * FC * itemsize)          # expansion one-hot
    temps = tb * FC * max(itemsize, 4) + 6 * tb * f_lane * 4   # scale temp + small f32 intermediates
    return blocks + consts + temps


def _pick_batch_tile(B, FC, F, itemsize, *, vmem_budget_bytes=16 << 20):
    """Largest layout-legal divisor tile TB of B that fits the VMEM budget, preferring
    B // TB >= 2 grid steps (pipeline overlap + v7x megacore on the parallel batch axis)."""
    cands = sorted({tb for tb in range(8, B + 1, 8) if B % tb == 0} | {B}, reverse=True)
    for require_split in (True, False):
        for tb in cands:
            if require_split and B // tb < 2:
                continue
            if _kernel_vmem_bytes(tb, FC, F, itemsize) <= vmem_budget_bytes:
                return tb
    return min(cands)


def gumbel_feature_importance(x, weight, bias, gumbel_noise, *,
                              hard: bool = False, tau: float = 1.0,
                              approx_reciprocal: bool = True):
    """x: (B, F, C); weight: (1, C) torch-style Linear weight; bias: (1,);
    gumbel_noise: (B, F) standard Gumbel draws.
    Returns (out (B, F, C) in x.dtype, x_proj_soft (B, F) f32)."""
    B, F, C = x.shape
    FC = F * C
    dtype = x.dtype
    itemsize = jnp.dtype(dtype).itemsize

    # Lane-dense layout: flatten (F, C) so x/out blocks are (TB, F*C).
    x_flat = x.reshape(B, FC)

    w = jnp.asarray(weight, jnp.float32).reshape(1, C)
    eye_f = jnp.eye(F, dtype=jnp.float32)
    # Block-diagonal (F*C, F) weight: W_bd[f*C + c, f] = w[c]   -> proj on the MXU.
    w_bd = jnp.kron(eye_f, w.reshape(C, 1)).astype(dtype)
    # One-hot expansion (F, F*C): E[f, f*C + c] = 1             -> repeats each scale over C lanes.
    expand = jnp.kron(eye_f, jnp.ones((1, C), jnp.float32)).astype(dtype)

    b_smem = jnp.asarray(bias, jnp.float32).reshape(1, 1)
    g = jnp.asarray(gumbel_noise, jnp.float32).reshape(B, F)

    tb = _pick_batch_tile(B, FC, F, itemsize)
    grid = (B // tb,)
    vmem_needed = _kernel_vmem_bytes(tb, FC, F, itemsize)
    vmem_limit = int(min(32 << 20, max(16 << 20, vmem_needed * 3 // 2 + (1 << 20))))

    kernel = functools.partial(_gumbel_feature_importance_kernel,
                               hard=hard, tau=float(tau),
                               approx_recip=approx_reciprocal)

    cost = pl.CostEstimate(
        flops=4 * B * FC * F + 2 * B * FC,
        transcendentals=0 if hard else B * F,
        bytes_accessed=2 * B * FC * itemsize + 2 * B * F * 4,
    )

    out_flat, soft = pl.pallas_call(
        kernel,
        out_shape=(jax.ShapeDtypeStruct((B, FC), dtype),
                   jax.ShapeDtypeStruct((B, F), jnp.float32)),
        grid=grid,
        in_specs=[
            pl.BlockSpec((tb, FC), lambda i: (i, 0)),               # x, lane-dense, native dtype
            pl.BlockSpec((FC, F), lambda i: (0, 0)),                # block-diagonal weight
            pl.BlockSpec((F, FC), lambda i: (0, 0)),                # expansion one-hot
            pl.BlockSpec((1, 1), lambda i: (0, 0),
                         memory_space=pltpu.SMEM),                  # bias scalar
            pl.BlockSpec((tb, F), lambda i: (i, 0)),                # gumbel noise
        ],
        out_specs=(
            pl.BlockSpec((tb, FC), lambda i: (i, 0)),
            pl.BlockSpec((tb, F), lambda i: (i, 0)),
        ),
        compiler_params=pltpu.CompilerParams(
            dimension_semantics=("parallel",),
            vmem_limit_bytes=vmem_limit),
        cost_estimate=cost,
    )(x_flat, w_bd, expand, b_smem, g)
    return out_flat.reshape(B, F, C), soft


if __name__ == "__main__":
    key = jax.random.PRNGKey(0)
    k_x, k_w, k_b, k_g = jax.random.split(key, 4)

    B, F, C = 2, 8, 32   # batch, num_features (softmax axis), channels
    x = jax.random.normal(k_x, (B, F, C), dtype=jnp.float32)

    # Deterministic "Linear(channels, 1)" parameters (torch init shapes: weight (1, C), bias (1,)).
    bound = 1.0 / jnp.sqrt(C)
    weight = jax.random.uniform(k_w, (1, C), minval=-bound, maxval=bound, dtype=jnp.float32)
    bias = jax.random.uniform(k_b, (1,), minval=-bound, maxval=bound, dtype=jnp.float32)

    # Standard Gumbel noise, sampled in the wrapper (glue).
    gumbel_noise = jax.random.gumbel(k_g, (B, F), dtype=jnp.float32)

    # Pure-JAX reference.
    proj_ref = (x @ weight.T).squeeze(-1) + bias[0]
    logits_ref = proj_ref + gumbel_noise
    soft_ref = jax.nn.softmax(logits_ref, axis=-1)
    out_ref = soft_ref[..., None] * x

    # --- soft path, f32 input ---
    out, x_proj_soft = gumbel_feature_importance(x, weight, bias, gumbel_noise,
                                                 hard=False, tau=1.0)
    jax.block_until_ready((out, x_proj_soft))
    assert jnp.allclose(out, out_ref, atol=5e-3, rtol=5e-3)
    assert jnp.allclose(x_proj_soft, soft_ref, atol=5e-3, rtol=5e-3)

    # --- soft path, native bf16 input (bf16 feeds MXU/VPU directly, no wrapper upcast) ---
    out_bf, soft_bf = gumbel_feature_importance(x.astype(jnp.bfloat16), weight, bias,
                                                gumbel_noise, hard=False, tau=1.0)
    jax.block_until_ready((out_bf, soft_bf))
    assert out_bf.dtype == jnp.bfloat16
    assert jnp.allclose(out_bf.astype(jnp.float32), out_ref, atol=5e-2, rtol=5e-2)
    assert jnp.allclose(soft_bf, soft_ref, atol=5e-2, rtol=5e-2)

    # --- hard path ---
    out_h, soft_h = gumbel_feature_importance(x, weight, bias, gumbel_noise,
                                              hard=True, tau=1.0)
    jax.block_until_ready((out_h, soft_h))
    onehot_ref = jax.nn.one_hot(jnp.argmax(logits_ref, axis=-1), F, dtype=jnp.float32)
    assert jnp.allclose(soft_h, onehot_ref, atol=1e-6)
    assert jnp.allclose(out_h, onehot_ref[..., None] * x, atol=1e-5, rtol=1e-5)

    print("KERNEL_OK")
</pallas_src>

<mosaic_0001>
module attributes {stable_mosaic.version = 11 : i64} {
  func.func @_gumbel_feature_importance_kernel(%arg0: i32, %arg1: memref<2x256xf32, #tpu.memory_space<vmem>>, %arg2: memref<256x8xf32, #tpu.memory_space<vmem>>, %arg3: memref<8x256xf32, #tpu.memory_space<vmem>>, %arg4: memref<1x1xf32, #tpu.memory_space<smem>>, %arg5: memref<2x8xf32, #tpu.memory_space<vmem>>, %arg6: memref<2x256xf32, #tpu.memory_space<vmem>>, %arg7: memref<2x8xf32, #tpu.memory_space<vmem>>) attributes {dimension_semantics = [#tpu.dimension_semantics<parallel>], iteration_bounds = array<i64: 1>, scalar_prefetch = 0 : i64, scratch_operands = 0 : i64, tpu.core_type = #tpu.core_type<tc>, window_params = [{transform_indices = @transform_0, window_bounds = array<i64: 2, 256>}, {pipeline_mode = #tpu.pipeline_mode<synchronous>, transform_indices = @transform_1, window_bounds = array<i64: 256, 8>}, {pipeline_mode = #tpu.pipeline_mode<synchronous>, transform_indices = @transform_2, window_bounds = array<i64: 8, 256>}, {transform_indices = @transform_3, window_bounds = array<i64: 1, 1>}, {transform_indices = @transform_4, window_bounds = array<i64: 2, 8>}, {transform_indices = @transform_5, window_bounds = array<i64: 2, 256>}, {transform_indices = @transform_6, window_bounds = array<i64: 2, 8>}]} {
    %c0 = arith.constant 0 : index
    %c0_0 = arith.constant 0 : index
    %0 = vector.load %arg1[%c0, %c0_0] : memref<2x256xf32, #tpu.memory_space<vmem>>, vector<2x256xf32>
    %c0_1 = arith.constant 0 : index
    %c0_2 = arith.constant 0 : index
    %1 = vector.load %arg2[%c0_1, %c0_2] : memref<256x8xf32, #tpu.memory_space<vmem>>, vector<256x8xf32>
    %cst = arith.constant dense<0.000000e+00> : vector<2x8xf32>
    %2 = tpu.matmul %0, %1, %cst {dimension_numbers = #tpu.dot_dimension_numbers<[1], [0], [0], [1], [0, 0, 1, 1], [], []>} : vector<2x256xf32>, vector<256x8xf32>, vector<2x8xf32> -> vector<2x8xf32>
    %c0_3 = arith.constant 0 : index
    %c0_4 = arith.constant 0 : index
    %3 = memref.load %arg4[%c0_3, %c0_4] : memref<1x1xf32, #tpu.memory_space<smem>>
    %4 = vector.broadcast %3 : f32 to vector<2x8xf32>
    %5 = arith.addf %2, %4 : vector<2x8xf32>
    %c0_5 = arith.constant 0 : index
    %c0_6 = arith.constant 0 : index
    %6 = vector.load %arg5[%c0_5, %c0_6] : memref<2x8xf32, #tpu.memory_space<vmem>>, vector<2x8xf32>
    %7 = arith.addf %5, %6 : vector<2x8xf32>
    %cst_7 = arith.constant 1.000000e+00 : f32
    %8 = vector.broadcast %cst_7 : f32 to vector<2x8xf32>
    %9 = arith.mulf %7, %8 : vector<2x8xf32>
    %cst_8 = arith.constant dense<0xFF800000> : vector<2xf32>
    %10 = vector.multi_reduction <maximumf>, %9, %cst_8 [1] : vector<2x8xf32> to vector<2xf32>
    %11 = vector.shape_cast %10 : vector<2xf32> to vector<2x1xf32>
    %12 = vector.broadcast %11 : vector<2x1xf32> to vector<2x8xf32>
    %13 = arith.subf %9, %12 : vector<2x8xf32>
    %14 = math.exp %13 : vector<2x8xf32>
    %cst_9 = arith.constant dense<0.000000e+00> : vector<2xf32>
    %15 = vector.multi_reduction <add>, %14, %cst_9 [1] : vector<2x8xf32> to vector<2xf32>
    %16 = vector.shape_cast %15 : vector<2xf32> to vector<2x1xf32>
    %17 = tpu.reciprocal %16 {approx = true} : vector<2x1xf32> -> vector<2x1xf32>
    %18 = vector.broadcast %17 : vector<2x1xf32> to vector<2x8xf32>
    %19 = arith.mulf %14, %18 : vector<2x8xf32>
    %c0_10 = arith.constant 0 : index
    %c0_11 = arith.constant 0 : index
    %20 = vector.load %arg7[%c0_10, %c0_11] : memref<2x8xf32, #tpu.memory_space<vmem>>, vector<2x8xf32>
    tpu.vector_store %arg7[%c0_10, %c0_11], %19 {strides = array<i32>} : memref<2x8xf32, #tpu.memory_space<vmem>>, vector<2x8xf32>,
    %c0_12 = arith.constant 0 : index
    %c0_13 = arith.constant 0 : index
    %21 = vector.load %arg3[%c0_12, %c0_13] : memref<8x256xf32, #tpu.memory_space<vmem>>, vector<8x256xf32>
    %cst_14 = arith.constant dense<0.000000e+00> : vector<2x256xf32>
    %22 = tpu.matmul %19, %21, %cst_14 {dimension_numbers = #tpu.dot_dimension_numbers<[1], [0], [0], [1], [0, 0, 1, 1], [], []>} : vector<2x8xf32>, vector<8x256xf32>, vector<2x256xf32> -> vector<2x256xf32>
    %23 = arith.mulf %22, %0 : vector<2x256xf32>
    %c0_15 = arith.constant 0 : index
    %c0_16 = arith.constant 0 : index
    %24 = vector.load %arg6[%c0_15, %c0_16] : memref<2x256xf32, #tpu.memory_space<vmem>>, vector<2x256xf32>
    tpu.vector_store %arg6[%c0_15, %c0_16], %23 {strides = array<i32>} : memref<2x256xf32, #tpu.memory_space<vmem>>, vector<2x256xf32>,
    return
  }
  func.func @transform_0(%arg0: i32) -> (i32, i32) {
    %c0_i32 = arith.constant 0 : i32
    %c0_i32_0 = arith.constant 0 : i32
    return %arg0, %c0_i32 : i32, i32
  }
  func.func @transform_1(%arg0: i32) -> (i32, i32) {
    %c0_i32 = arith.constant 0 : i32
    %c0_i32_0 = arith.constant 0 : i32
    %c0_i32_1 = arith.constant 0 : i32
    return %c0_i32, %c0_i32_0 : i32, i32
  }
  func.func @transform_2(%arg0: i32) -> (i32, i32) {
    %c0_i32 = arith.constant 0 : i32
    %c0_i32_0 = arith.constant 0 : i32
    %c0_i32_1 = arith.constant 0 : i32
    return %c0_i32, %c0_i32_0 : i32, i32
  }
  func.func @transform_3(%arg0: i32) -> (i32, i32) {
    %c0_i32 = arith.constant 0 : i32
    %c0_i32_0 = arith.constant 0 : i32
    %c0_i32_1 = arith.constant 0 : i32
    return %c0_i32, %c0_i32_0 : i32, i32
  }
  func.func @transform_4(%arg0: i32) -> (i32, i32) {
    %c0_i32 = arith.constant 0 : i32
    %c0_i32_0 = arith.constant 0 : i32
    return %arg0, %c0_i32 : i32, i32
  }
  func.func @transform_5(%arg0: i32) -> (i32, i32) {
    %c0_i32 = arith.constant 0 : i32
    %c0_i32_0 = arith.constant 0 : i32
    return %arg0, %c0_i32 : i32, i32
  }
  func.func @transform_6(%arg0: i32) -> (i32, i32) {
    %c0_i32 = arith.constant 0 : i32
    %c0_i32_0 = arith.constant 0 : i32
    return %arg0, %c0_i32 : i32, i32
  }
}

</mosaic_0001>

<llo_original>
// kernel: tpu_custom_call.1
$region0: #{tpu_custom_call.1}
  #allocation0 [shape = 'u32[]', space=smem, size = 0x4, offset = 0x4, fixed_abs, tag = 'smem constant byte address 0x4 - core index']
  #allocation1 [shape = 'u32[144,128]{1,0:T(1,128)}', space=vmem, size = 0x12000, scoped, tag = 'internal scratch']
  #allocation2 [shape = 'f32[1,1]{1,0:T(1,128)S(6)}', space=smem, size = 0x200, scoped, tag = 'scoped memory for tpu_custom_call.1']
  %s0 = inlined_call_operand.vmem [shape: f32[2,256], index: 0, kind: input, shape index: {}]
  %s1 = inlined_call_operand.vmem [shape: f32[256,8], index: 1, kind: input, shape index: {}]
  %s2 = inlined_call_operand.vmem [shape: f32[8,256], index: 2, kind: input, shape index: {}]
  %s3 = inlined_call_operand.<no memory space> [shape: f32[1,1], index: 3, kind: input, shape index: {}]
  %s4 = inlined_call_operand.vmem [shape: f32[2,8], index: 4, kind: input, shape index: {}]
  %s5 = inlined_call_operand.hbm [shape: f32[2,256], index: 5, kind: output, shape index: {0}]
  %s6 = inlined_call_operand.hbm [shape: f32[2,8], index: 6, kind: output, shape index: {1}]
  %7 = xla_tuple %s5, %s6
  %s8 = sld [smem:[#allocation0]]
  $region38: #{tpu_custom_call.1} parent=0
    _
  %s10 = ssub.s32 1, %s8
  %s11 = scalar_select 0, %s10, %s8
  %12 = sst [smem:[#allocation2]] %s3
  $region1: #{tpu_custom_call.1} parent=0
    #allocation3 [shape = 'u8[2048]{0}', space=vmem, size = 0x800, scoped, tag = 'output window, operand 0, single buffered']
    #allocation4 [shape = 's32[1]{0}', space=sflag, size = 0x4, scoped, tag = 'scoped memory for tpu_custom_call.1']
    #allocation5 [shape = 'u8[1024]{0}', space=vmem, size = 0x400, scoped, tag = 'output window, operand 1, single buffered']
    #allocation6 [shape = 's32[1]{0}', space=sflag, size = 0x4, scoped, tag = 'scoped memory for tpu_custom_call.1']
    %13 = vsyncpa [#allocation4], 0
    %14 = vsyncpa [#allocation6], 0
    // Predicated region
    $region2: #{tpu_custom_call.1} parent=1 // pred_check
      _
    $region3: #{tpu_custom_call.1} parent=1 // pred_check_branch
      %16 = sbr.rel (0) target = $region5
    $region4: #{tpu_custom_call.1} parent=1 // pred_region
      _
    $region5: #{tpu_custom_call.1} parent=1 // pred_fallthru
      _
    // Predicated region
    $region6: #{tpu_custom_call.1} parent=1 // pred_check
      _
    $region7: #{tpu_custom_call.1} parent=1 // pred_check_branch
      %18 = sbr.rel (0) target = $region9
    $region8: #{tpu_custom_call.1} parent=1 // pred_region
      _
    $region9: #{tpu_custom_call.1} parent=1 // pred_fallthru
      _
    // Predicated region
    $region10: #{tpu_custom_call.1} parent=1 // pred_check
      _
    $region11: #{tpu_custom_call.1} parent=1 // pred_check_branch
      %20 = sbr.rel (0) target = $region13
    $region12: #{tpu_custom_call.1} parent=1 // pred_region
      _
    $region13: #{tpu_custom_call.1} parent=1 // pred_fallthru
      _
    // Predicated region
    $region14: #{tpu_custom_call.1} parent=1 // pred_check
      _
    $region15: #{tpu_custom_call.1} parent=1 // pred_check_branch
      %22 = sbr.rel (0) target = $region17
    $region16: #{tpu_custom_call.1} parent=1 // pred_region
      _
    $region17: #{tpu_custom_call.1} parent=1 // pred_fallthru
      _
    // Predicated region
    $region18: #{tpu_custom_call.1} parent=1 // pred_check
      _
    $region19: #{tpu_custom_call.1} parent=1 // pred_check_branch
      %24 = sbr.rel (0) target = $region21
    $region20: #{tpu_custom_call.1} parent=1 // pred_region
      _
    $region21: #{tpu_custom_call.1} parent=1 // pred_fallthru
      _
    %v25 = vld [vmem:[%s0] sm:$0xf]
    %v26 = vld [vmem:[%s1] sm:$0xff]
    %v27 = vld [vmem:[%s1 + $0x8] sm:$0xff]
    %v28 = vld [vmem:[%s1 + $0x10] sm:$0xff]
    %v29 = vld [vmem:[%s1 + $0x18] sm:$0xff]
    %v30 = vld [vmem:[%s1 + $0x20] sm:$0xff]
    %v31 = vld [vmem:[%s1 + $0x28] sm:$0xff]
    %v32 = vld [vmem:[%s1 + $0x30] sm:$0xff]
    %v33 = vld [vmem:[%s1 + $0x38] sm:$0xff]
    %v34 = vld [vmem:[%s1 + $0x40] sm:$0xff]
    %v35 = vld [vmem:[%s1 + $0x48] sm:$0xff]
    %v36 = vld [vmem:[%s1 + $0x50] sm:$0xff]
    %v37 = vld [vmem:[%s1 + $0x58] sm:$0xff]
    %v38 = vld [vmem:[%s1 + $0x60] sm:$0xff]
    %v39 = vld [vmem:[%s1 + $0x68] sm:$0xff]
    %v40 = vld [vmem:[%s1 + $0x70] sm:$0xff]
    %v41 = vld [vmem:[%s1 + $0x78] sm:$0xff]
    %v42 = vld [vmem:[%s1 + $0x80] sm:$0xff]
    %v43 = vld [vmem:[%s1 + $0x88] sm:$0xff]
    %v44 = vld [vmem:[%s1 + $0x90] sm:$0xff]
    %v45 = vld [vmem:[%s1 + $0x98] sm:$0xff]
    %v46 = vld [vmem:[%s1 + $0xa0] sm:$0xff]
    %v47 = vld [vmem:[%s1 + $0xa8] sm:$0xff]
    %v48 = vld [vmem:[%s1 + $0xb0] sm:$0xff]
    %v49 = vld [vmem:[%s1 + $0xb8] sm:$0xff]
    %v50 = vld [vmem:[%s1 + $0xc0] sm:$0xff]
    %v51 = vld [vmem:[%s1 + $0xc8] sm:$0xff]
    %v52 = vld [vmem:[%s1 + $0xd0] sm:$0xff]
    %v53 = vld [vmem:[%s1 + $0xd8] sm:$0xff]
    %v54 = vld [vmem:[%s1 + $0xe0] sm:$0xff]
    %v55 = vld [vmem:[%s1 + $0xe8] sm:$0xff]
    %v56 = vld [vmem:[%s1 + $0xf0] sm:$0xff]
    %v57 = vld [vmem:[%s1 + $0xf8] sm:$0xff]
    %s58 = sld [smem:[#allocation2]]
    %v59 = vstv %s58
    %v62 = vunpack.c.l.s4 1983009808
    %v63 = vunpack.c.0.s8 %v62
    %v64 = vlaneseq
    %v65 = vshrl.u32 %v64, 7
    %v66 = vsub.s32 %v63, %v65
    %v67 = vrot.slane %v25, %v66
    %v68 = vcombine.high %v67, %v67
    %71 = vmatprep.subr.mxu0 0.0
    %72 = vmatpush1.msra.mxu0 %v26
    %73 = vmatprep.subr.mxu0 0.0
    %74 = vmatpush1.msra.mxu0 %v27
    %75 = vmatprep.subr.mxu0 0.0
    %76 = vmatpush1.msra.mxu0 %v28
    %77 = vmatprep.subr.mxu0 0.0
    %78 = vmatpush1.msra.mxu0 %v29
    %79 = vmatprep.subr.mxu0 0.0
    %80 = vmatpush1.msra.mxu0 %v30
    %81 = vmatprep.subr.mxu0 0.0
    %82 = vmatpush1.msra.mxu0 %v31
    %83 = vmatprep.subr.mxu0 0.0
    %84 = vmatpush1.msra.mxu0 %v32
    %85 = vmatprep.subr.mxu0 0.0
    %86 = vmatpush1.msra.mxu0 %v33
    %87 = vmatprep.subr.mxu0 0.0
    %88 = vmatpush1.msra.mxu0 %v34
    %89 = vmatprep.subr.mxu0 0.0
    %90 = vmatpush1.msra.mxu0 %v35
    %91 = vmatprep.subr.mxu0 0.0
    %92 = vmatpush1.msra.mxu0 %v36
    %93 = vmatprep.subr.mxu0 0.0
    %94 = vmatpush1.msra.mxu0 %v37
    %95 = vmatprep.subr.mxu0 0.0
    %96 = vmatpush1.msra.mxu0 %v38
    %97 = vmatprep.subr.mxu0 0.0
    %98 = vmatpush1.msra.mxu0 %v39
    %99 = vmatprep.subr.mxu0 0.0
    %100 = vmatpush1.msra.mxu0 %v40
    %101 = vmatprep.subr.mxu0 0.0
    %102 = vmatpush1.msra.mxu0 %v41
    %103 = vmatprep.subr.mxu0 0.0
    %104 = vmatpush1.msra.mxu0 %v42
    %105 = vmatprep.subr.mxu0 0.0
    %106 = vmatpush1.msra.mxu0 %v43
    %107 = vmatprep.subr.mxu0 0.0
    %108 = vmatpush1.msra.mxu0 %v44
    %109 = vmatprep.subr.mxu0 0.0
    %110 = vmatpush1.msra.mxu0 %v45
    %111 = vmatprep.subr.mxu0 0.0
    %112 = vmatpush1.msra.mxu0 %v46
    %113 = vmatprep.subr.mxu0 0.0
    %114 = vmatpush1.msra.mxu0 %v47
    %115 = vmatprep.subr.mxu0 0.0
    %116 = vmatpush1.msra.mxu0 %v48
    %117 = vmatprep.subr.mxu0 0.0
    %118 = vmatpush1.msra.mxu0 %v49
    %119 = vmatprep.subr.mxu0 0.0
    %120 = vmatpush1.msra.mxu0 %v50
    %121 = vmatprep.subr.mxu0 0.0
    %122 = vmatpush1.msra.mxu0 %v51
    %123 = vmatprep.subr.mxu0 0.0
    %124 = vmatpush1.msra.mxu0 %v52
    %125 = vmatprep.subr.mxu0 0.0
    %126 = vmatpush1.msra.mxu0 %v53
    %127 = vmatprep.subr.mxu0 0.0
    %128 = vmatpush1.msra.mxu0 %v54
    %129 = vmatprep.subr.mxu0 0.0
    %130 = vmatpush1.msra.mxu0 %v55
    %131 = vmatprep.subr.mxu0 0.0
    %132 = vmatpush1.msra.mxu0 %v56
    %133 = vmatprep.subr.mxu0 0.0
    %134 = vmatpush1.msra.mxu0 %v57
    %135 = vmatprep.mubr.f32.mxu0 %v68
    %136 = vmatmul.mubr.f32.gmra.mrb[0].mxu0 %v67
    %v137 = vpop.f32.mrb[0].mxu0
    %v138 = vadd.f32 %v59, %v137
    %v139 = vpop.f32.mrb[0].mxu0
    %140 = vdwg.mxu0
    %v141 = vld [vmem:[%s4] sm:$0x3]
    %v142 = vadd.f32 %v138, %v141
    %vm143 = vcmask 58368
    %v144 = vsel %vm143, %v142, -inf
    %145 = vmax.xlane.f32.xlu0 %v144
    %v146 = vpop.xlane.xlu0 %145
    %v147 = vsub.f32 %v142, %v146
    %v148 = vmul.f32 %v147, 1.442695
    %v149 = vpow.pop %v148
    %v150 = vsel %vm143, %v149, 0.0
    %151 = vadd.xlane.f32.xlu0 %v150
    %v152 = vpop.xlane.xlu0 %151
    %v153 = vrcp.pop %v152
    %v154 = vmul.f32 %v149, %v153
    %155 = vst.msk [vmem:[#allocation5] sm:$0x3] %vm143, %v154
    %v156 = vld [vmem:[%s2] sm:$0xff]
    %v157 = vld [vmem:[%s2 + $0x8] sm:$0xff]
    %vm158 = vcmask 64512
    %v160 = vsel %vm158, %v154, 0
    %162 = vmatprep.subr.mxu0 %v157
    %163 = vmatpush1.msra.mxu0 %v156
    %164 = vmatprep.subr.mxu0 0.0
    %165 = vmatpush1.msra.mxu0 0.0
    %166 = vmatprep.subr.mxu0 0.0
    %167 = vmatpush1.msra.mxu0 0.0
    %168 = vmatprep.subr.mxu0 0.0
    %169 = vmatpush1.msra.mxu0 0.0
    %170 = vmatprep.subr.mxu0 0.0
    %171 = vmatpush1.msra.mxu0 0.0
    %172 = vmatprep.subr.mxu0 0.0
    %173 = vmatpush1.msra.mxu0 0.0
    %174 = vmatprep.subr.mxu0 0.0
    %175 = vmatpush1.msra.mxu0 0.0
    %176 = vmatprep.subr.mxu0 0.0
    %177 = vmatpush1.msra.mxu0 0.0
    %178 = vmatprep.subr.mxu0 0.0
    %179 = vmatpush1.msra.mxu0 0.0
    %180 = vmatprep.subr.mxu0 0.0
    %181 = vmatpush1.msra.mxu0 0.0
    %182 = vmatprep.subr.mxu0 0.0
    %183 = vmatpush1.msra.mxu0 0.0
    %184 = vmatprep.subr.mxu0 0.0
    %185 = vmatpush1.msra.mxu0 0.0
    %186 = vmatprep.subr.mxu0 0.0
    %187 = vmatpush1.msra.mxu0 0.0
    %188 = vmatprep.subr.mxu0 0.0
    %189 = vmatpush1.msra.mxu0 0.0
    %190 = vmatprep.subr.mxu0 0.0
    %191 = vmatpush1.msra.mxu0 0.0
    %192 = vmatprep.subr.mxu0 0.0
    %193 = vmatpush1.msra.mxu0 0.0
    %194 = vmatprep.subr.mxu0 0.0
    %195 = vmatpush1.msra.mxu0 0.0
    %196 = vmatprep.subr.mxu0 0.0
    %197 = vmatpush1.msra.mxu0 0.0
    %198 = vmatprep.subr.mxu0 0.0
    %199 = vmatpush1.msra.mxu0 0.0
    %200 = vmatprep.subr.mxu0 0.0
    %201 = vmatpush1.msra.mxu0 0.0
    %202 = vmatprep.subr.mxu0 0.0
    %203 = vmatpush1.msra.mxu0 0.0
    %204 = vmatprep.subr.mxu0 0.0
    %205 = vmatpush1.msra.mxu0 0.0
    %206 = vmatprep.subr.mxu0 0.0
    %207 = vmatpush1.msra.mxu0 0.0
    %208 = vmatprep.subr.mxu0 0.0
    %209 = vmatpush1.msra.mxu0 0.0
    %210 = vmatprep.subr.mxu0 0.0
    %211 = vmatpush1.msra.mxu0 0.0
    %212 = vmatprep.subr.mxu0 0.0
    %213 = vmatpush1.msra.mxu0 0.0
    %214 = vmatprep.subr.mxu0 0.0
    %215 = vmatpush1.msra.mxu0 0.0
    %216 = vmatprep.subr.mxu0 0.0
    %217 = vmatpush1.msra.mxu0 0.0
    %218 = vmatprep.subr.mxu0 0.0
    %219 = vmatpush1.msra.mxu0 0.0
    %220 = vmatprep.subr.mxu0 0.0
    %221 = vmatpush1.msra.mxu0 0.0
    %222 = vmatprep.subr.mxu0 0.0
    %223 = vmatpush1.msra.mxu0 0.0
    %224 = vmatprep.subr.mxu0 0.0
    %225 = vmatpush1.msra.mxu0 0.0
    %226 = vmatprep.mubr.f32.mxu0 0.0
    %227 = vmatmul.mubr.f32.gmra.mrb[0].mxu0 %v160
    %v228 = vpop.f32.mrb[0].mxu0
    %v229 = vadd.f32 0.0, %v228
    %v230 = vpop.f32.mrb[0].mxu0
    %v231 = vadd.f32 0.0, %v230
    %232 = vdwg.mxu0
    %v233 = vmul.f32 %v229, %v67
    %v234 = vmul.f32 %v231, %v68
    %v237 = vcombine.low %v233, %v234
    %v239 = vunpack.c.l.s4 1983009808
    %v240 = vunpack.c.0.s8 %v239
    %v241 = vlaneseq
    %v242 = vshrl.u32 %v241, 7
    %v243 = vsub.s32 %v240, %v242
    %v244 = vrot.slane %v237, %v243
    %246 = vst [vmem:[#allocation3] sm:$0xf] %v244
    // Predicated region
    $region22: #{tpu_custom_call.1} parent=1 // pred_check
      _
    $region23: #{tpu_custom_call.1} parent=1 // pred_check_branch
      %248 = sbr.rel (0) target = $region25
    $region24: #{tpu_custom_call.1} parent=1 // pred_region
      %s250 = ssub.s32 64, 64
      %251 = vsyncadd [#allocation4], %s250
      %s253 = sshll.u32 [#allocation3], 4
      %s254 = int_to_ptr.vmem [resolvable:$true] %s253
      %256 = dma.vmem_to_hbm [thread:$0]  %s254, 64, %s5, [#allocation4]
    $region25: #{tpu_custom_call.1} parent=1 // pred_fallthru
      _
    // Predicated region
    $region26: #{tpu_custom_call.1} parent=1 // pred_check
      _
    $region27: #{tpu_custom_call.1} parent=1 // pred_check_branch
      %258 = sbr.rel (0) target = $region29
    $region28: #{tpu_custom_call.1} parent=1 // pred_region
      %s260 = ssub.s32 32, 32
      %261 = vsyncadd [#allocation6], %s260
      %s263 = sshll.u32 [#allocation5], 4
      %s264 = int_to_ptr.vmem [resolvable:$true] %s263
      %266 = dma.vmem_to_hbm [thread:$0]  %s264, 32, %s6, [#allocation6]
    $region29: #{tpu_custom_call.1} parent=1 // pred_fallthru
      _
    // Predicated region
    $region30: #{tpu_custom_call.1} parent=1 // pred_check
      _
    $region31: #{tpu_custom_call.1} parent=1 // pred_check_branch
      %268 = sbr.rel (0) target = $region33
    $region32: #{tpu_custom_call.1} parent=1 // pred_region
      %269 = dma.done [#allocation4], 64
    $region33: #{tpu_custom_call.1} parent=1 // pred_fallthru
      _
    // Predicated region
    $region34: #{tpu_custom_call.1} parent=1 // pred_check
      _
    $region35: #{tpu_custom_call.1} parent=1 // pred_check_branch
      %271 = sbr.rel (0) target = $region37
    $region36: #{tpu_custom_call.1} parent=1 // pred_region
      %272 = dma.done [#allocation6], 32
    $region37: #{tpu_custom_call.1} parent=1 // pred_fallthru
      _
    %273 = vsyncpa [#allocation4], 1
    %274 = vsyncpa [#allocation6], 1

</llo_original>
